<compile_context>
chip_gen: v5e
topology: v5e:2x2
jax: 0.10.0
libtpu: 0.0.40
codegen_flags: <defaults>
</compile_context>

<pallas_src>
import functools

import jax
import jax.numpy as jnp
from jax.experimental import pallas as pl
from jax.experimental.pallas import tpu as pltpu


def _round_up(x, m):
    return (x + m - 1) // m * m


def _sage_layer_kernel(adj_ref, xs_ref, xt_ref, w_ref, b_ref, out_ref, acc_ref,
                       *, cout_valid, apply_relu, apply_log_softmax):
    k = pl.program_id(1)

    @pl.when(k == 0)
    def _init():
        acc_ref[...] = jnp.zeros_like(acc_ref)

    # mean aggregation of neighbor features, accumulated over source tiles
    acc_ref[...] += jnp.dot(adj_ref[...], xs_ref[...],
                            preferred_element_type=jnp.float32)

    @pl.when(k == pl.num_programs(1) - 1)
    def _finalize():
        # fused projection: [agg, x_target] @ [[W_l],[W_r]] + b
        z = jnp.concatenate(
            [acc_ref[...], xt_ref[...].astype(jnp.float32)], axis=-1)
        out = jnp.dot(z, w_ref[...], preferred_element_type=jnp.float32)
        out = out + b_ref[...]                        # (1, Cout_p) broadcast
        if apply_relu:
            out = jnp.maximum(out, 0.0)
        if apply_log_softmax:
            lane = jax.lax.broadcasted_iota(jnp.int32, out.shape, 1)
            valid = lane < cout_valid
            out = jnp.where(valid, out, -jnp.inf)     # exclude padded lanes
            m = jnp.max(out, axis=-1, keepdims=True)
            lse = jnp.log(jnp.sum(jnp.exp(out - m), axis=-1, keepdims=True))
            out = jnp.where(valid, out - m - lse, 0.0)
        out_ref[...] = out.astype(out_ref.dtype)


def sage_conv_layer(adj, x, w_l, w_r, b, *, apply_relu, apply_log_softmax,
                    tm_max=256, tk_max=512):
    """One SAGEConv layer (+ optional relu / log_softmax) as a tiled Pallas call.

    adj: (T, S) row-normalized dense adjacency, x: (S, Cin).
    Targets are assumed to be the first T rows of the source set (PyG
    NeighborSampler convention), so x_target is read from x inside the kernel.
    """
    num_targets, num_sources = adj.shape
    cin = x.shape[1]
    cout = w_l.shape[1]

    cin_p = _round_up(cin, 128)
    cout_p = _round_up(cout, 128)

    tm = tm_max if num_targets >= tm_max else _round_up(num_targets, 8)
    tk = tk_max if num_sources >= tk_max else _round_up(num_sources, 128)

    t_p = _round_up(num_targets, tm)
    # ensure the x-target view (rows < t_p) never indexes past x's padded rows
    s_p = _round_up(max(num_sources, t_p), tk)

    f32 = jnp.float32
    adj_p = jnp.zeros((t_p, s_p), f32).at[:num_targets, :num_sources].set(
        adj.astype(f32))
    x_p = jnp.zeros((s_p, cin_p), f32).at[:num_sources, :cin].set(
        x.astype(f32))
    w_cat = jnp.zeros((2 * cin_p, cout_p), f32)
    w_cat = w_cat.at[:cin, :cout].set(w_l.astype(f32))
    w_cat = w_cat.at[cin_p:cin_p + cin, :cout].set(w_r.astype(f32))
    b_p = jnp.zeros((1, cout_p), f32).at[:, :cout].set(
        b.reshape(1, -1).astype(f32))

    grid = (t_p // tm, s_p // tk)

    kernel = functools.partial(_sage_layer_kernel,
                               cout_valid=cout,
                               apply_relu=apply_relu,
                               apply_log_softmax=apply_log_softmax)

    out_p = pl.pallas_call(
        kernel,
        out_shape=jax.ShapeDtypeStruct((t_p, cout_p), f32),
        grid_spec=pltpu.PrefetchScalarGridSpec(
            num_scalar_prefetch=0,
            grid=grid,
            in_specs=[
                pl.BlockSpec((tm, tk), lambda i, k: (i, k)),            # adj
                pl.BlockSpec((tk, cin_p), lambda i, k: (k, 0)),         # x (sources)
                pl.BlockSpec((tm, cin_p), lambda i, k: (i, 0)),         # x (targets)
                pl.BlockSpec((2 * cin_p, cout_p), lambda i, k: (0, 0)),  # W_cat
                pl.BlockSpec((1, cout_p), lambda i, k: (0, 0)),         # bias
            ],
            out_specs=pl.BlockSpec((tm, cout_p), lambda i, k: (i, 0)),
            scratch_shapes=[pltpu.VMEM((tm, cin_p), jnp.float32)],
        ),
        compiler_params=pltpu.CompilerParams(
            dimension_semantics=("parallel", "arbitrary")),
    )(adj_p, x_p, x_p, w_cat, b_p)

    return out_p[:num_targets, :cout]


def edge_index_to_mean_adj(edge_index, num_targets, num_sources):
    """Dense row-normalized adjacency reproducing scatter_mean aggregation."""
    # TODO(synk): for large fanout-sampled subgraphs replace this dense A@x
    # path with a scalar-prefetched gather aggregation (PrefetchScalarGridSpec
    # + per-target neighbor table); dense path is only sensible for small S.
    src = edge_index[0]
    tgt = edge_index[1]
    a = jnp.zeros((num_targets, num_sources), jnp.float32)
    a = a.at[tgt, src].add(1.0)
    deg = jnp.sum(a, axis=-1, keepdims=True)
    return a / jnp.maximum(deg, 1.0)


def sage_forward(x, adjs, params):
    """Mirror of SAGE.forward (eval-mode).

    adjs: list of (edge_index (2,E) int32, size=(num_sources, num_targets))
    params: list of (w_l (Cin,Cout), w_r (Cin,Cout), b (1,Cout)) per layer.
    """
    num_layers = len(params)
    for i, (edge_index, size) in enumerate(adjs):
        num_sources, num_targets = size
        adj = edge_index_to_mean_adj(edge_index, num_targets, num_sources)
        last = (i == num_layers - 1)
        w_l, w_r, b = params[i]
        x = sage_conv_layer(adj, x, w_l, w_r, b,
                            apply_relu=not last, apply_log_softmax=last)
        # TODO(synk): push_and_pull stale-embedding FIFO cache is host-side
        # stateful bookkeeping; skipped (stage==1 / empty-cache behavior).
        # F.dropout(p=0.5) is identity in eval mode.
    return x


def sage_forward_ref(x, adjs, params):
    """Pure-JAX reference (no Pallas) for correctness checking."""
    num_layers = len(params)
    hp = jax.lax.Precision.HIGHEST
    for i, (edge_index, size) in enumerate(adjs):
        num_sources, num_targets = size
        x_target = x[:num_targets]
        adj = edge_index_to_mean_adj(edge_index, num_targets, num_sources)
        w_l, w_r, b = params[i]
        agg = jnp.dot(adj, x, precision=hp)
        out = (jnp.dot(agg, w_l, precision=hp)
               + jnp.dot(x_target, w_r, precision=hp) + b)
        if i < num_layers - 1:
            out = jax.nn.relu(out)
        else:
            out = jax.nn.log_softmax(out, axis=-1)
        x = out
    return x


def init_params(key, in_channels, hidden_channels, out_channels, num_layers):
    dims = ([in_channels] + [hidden_channels] * (num_layers - 1),
            [hidden_channels] * (num_layers - 1) + [out_channels])
    params = []
    for cin, cout in zip(*dims):
        key, k1, k2 = jax.random.split(key, 3)
        scale = (6.0 / (cin + cout)) ** 0.5  # glorot-uniform, matches PyG reset
        w_l = jax.random.uniform(k1, (cin, cout), jnp.float32, -scale, scale)
        w_r = jax.random.uniform(k2, (cin, cout), jnp.float32, -scale, scale)
        b = jnp.zeros((1, cout), jnp.float32)
        params.append((w_l, w_r, b))
    return params


if __name__ == "__main__":
    key = jax.random.PRNGKey(0)

    in_channels, hidden_channels, out_channels = 16, 32, 8
    num_layers = 2

    # sampled-subgraph sizes per hop: 16 sampled nodes -> 8 targets -> 4 targets
    n0, n1, n2 = 16, 8, 4
    e0, e1 = 32, 16

    key, kx, ke0s, ke0t, ke1s, ke1t, kp = jax.random.split(key, 7)
    x = jax.random.normal(kx, (n0, in_channels), jnp.float32)

    edge_index_0 = jnp.stack([
        jax.random.randint(ke0s, (e0,), 0, n0, jnp.int32),   # sources
        jax.random.randint(ke0t, (e0,), 0, n1, jnp.int32),   # targets
    ])
    edge_index_1 = jnp.stack([
        jax.random.randint(ke1s, (e1,), 0, n1, jnp.int32),
        jax.random.randint(ke1t, (e1,), 0, n2, jnp.int32),
    ])
    adjs = [(edge_index_0, (n0, n1)), (edge_index_1, (n1, n2))]

    params = init_params(kp, in_channels, hidden_channels, out_channels,
                         num_layers)

    out = sage_forward(x, adjs, params)
    out = jax.block_until_ready(out)
    assert out.shape == (n2, out_channels)
    # rows of log_softmax must sum to 1 in prob space
    assert jnp.allclose(jnp.sum(jnp.exp(out), axis=-1), 1.0, atol=1e-4)
    # match the pure-JAX reference
    ref = jax.block_until_ready(sage_forward_ref(x, adjs, params))
    assert jnp.allclose(out, ref, rtol=1e-2, atol=1e-2), (
        f"max abs err {jnp.max(jnp.abs(out - ref))}")
    print("KERNEL_OK")
</pallas_src>

<mosaic_0001>
module attributes {stable_mosaic.version = 11 : i64} {
  func.func @_sage_layer_kernel(%arg0: i32, %arg1: i32, %arg2: memref<8x128xf32, #tpu.memory_space<vmem>>, %arg3: memref<128x128xf32, #tpu.memory_space<vmem>>, %arg4: memref<8x128xf32, #tpu.memory_space<vmem>>, %arg5: memref<256x128xf32, #tpu.memory_space<vmem>>, %arg6: memref<1x128xf32, #tpu.memory_space<vmem>>, %arg7: memref<8x128xf32, #tpu.memory_space<vmem>>, %arg8: memref<8x128xf32, #tpu.memory_space<vmem>>) attributes {dimension_semantics = [#tpu.dimension_semantics<parallel>, #tpu.dimension_semantics<arbitrary>], iteration_bounds = array<i64: 1, 1>, scalar_prefetch = 0 : i64, scratch_operands = 1 : i64, tpu.core_type = #tpu.core_type<tc>, window_params = [{transform_indices = @transform_0, window_bounds = array<i64: 8, 128>}, {transform_indices = @transform_1, window_bounds = array<i64: 128, 128>}, {transform_indices = @transform_2, window_bounds = array<i64: 8, 128>}, {pipeline_mode = #tpu.pipeline_mode<synchronous>, transform_indices = @transform_3, window_bounds = array<i64: 256, 128>}, {pipeline_mode = #tpu.pipeline_mode<synchronous>, transform_indices = @transform_4, window_bounds = array<i64: 1, 128>}, {transform_indices = @transform_5, window_bounds = array<i64: 8, 128>}]} {
    %c0_i32 = arith.constant 0 : i32
    %0 = arith.cmpi eq, %arg1, %c0_i32 : i32
    %1 = arith.extui %0 : i1 to i32
    %c0_i32_0 = arith.constant 0 : i32
    %2 = arith.cmpi ne, %1, %c0_i32_0 : i32
    scf.if %2 {
      %cst_10 = arith.constant 0.000000e+00 : f32
      %12 = vector.broadcast %cst_10 : f32 to vector<8x128xf32>
      %c0_11 = arith.constant 0 : index
      %c0_12 = arith.constant 0 : index
      %13 = vector.load %arg8[%c0_11, %c0_12] : memref<8x128xf32, #tpu.memory_space<vmem>>, vector<8x128xf32>
      tpu.vector_store %arg8[%c0_11, %c0_12], %12 {strides = array<i32>} : memref<8x128xf32, #tpu.memory_space<vmem>>, vector<8x128xf32>,
    } else {
    }
    %c0 = arith.constant 0 : index
    %c0_1 = arith.constant 0 : index
    %3 = vector.load %arg8[%c0, %c0_1] : memref<8x128xf32, #tpu.memory_space<vmem>>, vector<8x128xf32>
    %c0_2 = arith.constant 0 : index
    %c0_3 = arith.constant 0 : index
    %4 = vector.load %arg2[%c0_2, %c0_3] : memref<8x128xf32, #tpu.memory_space<vmem>>, vector<8x128xf32>
    %c0_4 = arith.constant 0 : index
    %c0_5 = arith.constant 0 : index
    %5 = vector.load %arg3[%c0_4, %c0_5] : memref<128x128xf32, #tpu.memory_space<vmem>>, vector<128x128xf32>
    %cst = arith.constant dense<0.000000e+00> : vector<8x128xf32>
    %6 = tpu.matmul %4, %5, %cst {dimension_numbers = #tpu.dot_dimension_numbers<[1], [0], [0], [1], [0, 0, 1, 1], [], []>} : vector<8x128xf32>, vector<128x128xf32>, vector<8x128xf32> -> vector<8x128xf32>
    %7 = arith.addf %3, %6 : vector<8x128xf32>
    %c0_6 = arith.constant 0 : index
    %c0_7 = arith.constant 0 : index
    %8 = vector.load %arg8[%c0_6, %c0_7] : memref<8x128xf32, #tpu.memory_space<vmem>>, vector<8x128xf32>
    tpu.vector_store %arg8[%c0_6, %c0_7], %7 {strides = array<i32>} : memref<8x128xf32, #tpu.memory_space<vmem>>, vector<8x128xf32>,
    %c0_i32_8 = arith.constant 0 : i32
    %9 = arith.cmpi eq, %arg1, %c0_i32_8 : i32
    %10 = arith.extui %9 : i1 to i32
    %c0_i32_9 = arith.constant 0 : i32
    %11 = arith.cmpi ne, %10, %c0_i32_9 : i32
    scf.if %11 {
      %c0_10 = arith.constant 0 : index
      %c0_11 = arith.constant 0 : index
      %12 = vector.load %arg8[%c0_10, %c0_11] : memref<8x128xf32, #tpu.memory_space<vmem>>, vector<8x128xf32>
      %c0_12 = arith.constant 0 : index
      %c0_13 = arith.constant 0 : index
      %13 = vector.load %arg4[%c0_12, %c0_13] : memref<8x128xf32, #tpu.memory_space<vmem>>, vector<8x128xf32>
      %14 = tpu.concatenate %12, %13 in 1 : vector<8x128xf32>, vector<8x128xf32> -> vector<8x256xf32>
      %c0_14 = arith.constant 0 : index
      %c0_15 = arith.constant 0 : index
      %15 = vector.load %arg5[%c0_14, %c0_15] : memref<256x128xf32, #tpu.memory_space<vmem>>, vector<256x128xf32>
      %cst_16 = arith.constant dense<0.000000e+00> : vector<8x128xf32>
      %16 = tpu.matmul %14, %15, %cst_16 {dimension_numbers = #tpu.dot_dimension_numbers<[1], [0], [0], [1], [0, 0, 1, 1], [], []>} : vector<8x256xf32>, vector<256x128xf32>, vector<8x128xf32> -> vector<8x128xf32>
      %c0_17 = arith.constant 0 : index
      %c0_18 = arith.constant 0 : index
      %17 = vector.load %arg6[%c0_17, %c0_18] : memref<1x128xf32, #tpu.memory_space<vmem>>, vector<1x128xf32>
      %18 = vector.broadcast %17 : vector<1x128xf32> to vector<8x128xf32>
      %19 = arith.addf %16, %18 : vector<8x128xf32>
      %cst_19 = arith.constant 0.000000e+00 : f32
      %20 = vector.broadcast %cst_19 : f32 to vector<8x128xf32>
      %21 = arith.maximumf %19, %20 : vector<8x128xf32>
      %c0_20 = arith.constant 0 : index
      %c0_21 = arith.constant 0 : index
      %22 = vector.load %arg7[%c0_20, %c0_21] : memref<8x128xf32, #tpu.memory_space<vmem>>, vector<8x128xf32>
      tpu.vector_store %arg7[%c0_20, %c0_21], %21 {strides = array<i32>} : memref<8x128xf32, #tpu.memory_space<vmem>>, vector<8x128xf32>,
    } else {
    }
    return
  }
  func.func @transform_0(%arg0: i32, %arg1: i32) -> (i32, i32) {
    %c0_i32 = arith.constant 0 : i32
    return %arg0, %arg1 : i32, i32
  }
  func.func @transform_1(%arg0: i32, %arg1: i32) -> (i32, i32) {
    %c0_i32 = arith.constant 0 : i32
    %c0_i32_0 = arith.constant 0 : i32
    return %arg1, %c0_i32 : i32, i32
  }
  func.func @transform_2(%arg0: i32, %arg1: i32) -> (i32, i32) {
    %c0_i32 = arith.constant 0 : i32
    %c0_i32_0 = arith.constant 0 : i32
    return %arg0, %c0_i32 : i32, i32
  }
  func.func @transform_3(%arg0: i32, %arg1: i32) -> (i32, i32) {
    %c0_i32 = arith.constant 0 : i32
    %c0_i32_0 = arith.constant 0 : i32
    %c0_i32_1 = arith.constant 0 : i32
    return %c0_i32, %c0_i32_0 : i32, i32
  }
  func.func @transform_4(%arg0: i32, %arg1: i32) -> (i32, i32) {
    %c0_i32 = arith.constant 0 : i32
    %c0_i32_0 = arith.constant 0 : i32
    %c0_i32_1 = arith.constant 0 : i32
    return %c0_i32, %c0_i32_0 : i32, i32
  }
  func.func @transform_5(%arg0: i32, %arg1: i32) -> (i32, i32) {
    %c0_i32 = arith.constant 0 : i32
    %c0_i32_0 = arith.constant 0 : i32
    return %arg0, %c0_i32 : i32, i32
  }
}

</mosaic_0001>

<llo_original>
// kernel: tpu_custom_call.1
$region0: #{tpu_custom_call.1}
  #allocation0 [shape = 'u32[]', space=smem, size = 0x4, offset = 0x4, fixed_abs, tag = 'smem constant byte address 0x4 - core index']
  #allocation1 [shape = 'u32[72,128]{1,0:T(1,128)}', space=vmem, size = 0x9000, scoped, tag = 'internal scratch']
  #allocation2 [shape = 'f32[8,128]{1,0:T(8,128)}', space=vmem, size = 0x1000, scoped, tag = 'scratch operand']
  %s0 = inlined_call_operand.hbm [shape: f32[8,128], index: 0, kind: input, shape index: {}]
  %s1 = inlined_call_operand.hbm [shape: f32[128,128], index: 1, kind: input, shape index: {}]
  %s2 = inlined_call_operand.hbm [shape: f32[128,128], index: 2, kind: input, shape index: {}]
  %s3 = inlined_call_operand.hbm [shape: f32[256,128], index: 3, kind: input, shape index: {}]
  %s4 = inlined_call_operand.vmem [shape: f32[1,128], index: 4, kind: input, shape index: {}]
  %s5 = inlined_call_operand.hbm [shape: f32[8,128], index: 5, kind: output, shape index: {}]
  %s6 = sld [smem:[#allocation0]]
  $region54: #{tpu_custom_call.1} parent=0
    _
  %s8 = ssub.s32 1, %s6
  %s9 = scalar_select 0, %s8, %s6
  $region1: #{tpu_custom_call.1} parent=0
    #allocation3 [shape = 'u8[4096]{0}', space=vmem, size = 0x1000, scoped, tag = 'input window, operand 0, single buffered']
    #allocation4 [shape = 's32[1]{0}', space=sflag, size = 0x4, scoped, tag = 'scoped memory for tpu_custom_call.1']
    #allocation5 [shape = 's32[1]{0}', space=sflag, size = 0x4, scoped, tag = 'scoped memory for tpu_custom_call.1']
    #allocation6 [shape = 'u8[65536]{0}', space=vmem, size = 0x10000, scoped, tag = 'input window, operand 1, single buffered']
    #allocation7 [shape = 's32[1]{0}', space=sflag, size = 0x4, scoped, tag = 'scoped memory for tpu_custom_call.1']
    #allocation8 [shape = 'u8[4096]{0}', space=vmem, size = 0x1000, scoped, tag = 'input window, operand 2, single buffered']
    #allocation9 [shape = 'u8[131072]{0}', space=vmem, size = 0x20000, scoped, tag = 'input window, operand 3, single buffered']
    #allocation10 [shape = 's32[1]{0}', space=sflag, size = 0x4, scoped, tag = 'scoped memory for tpu_custom_call.1']
    #allocation11 [shape = 'u8[4096]{0}', space=vmem, size = 0x1000, scoped, tag = 'output window, operand 0, single buffered']
    %10 = vsyncpa [#allocation4], 0
    %11 = vsyncpa [#allocation7], 0
    %12 = vsyncpa [#allocation10], 0
    %13 = vsyncpa [#allocation5], 0
    // Predicated region
    $region2: #{tpu_custom_call.1} parent=1 // pred_check
      _
    $region3: #{tpu_custom_call.1} parent=1 // pred_check_branch
      %15 = sbr.rel (0) target = $region5
    $region4: #{tpu_custom_call.1} parent=1 // pred_region
      %17 = vsyncadd [#allocation4], 0
      %s19 = sshll.u32 %s0, 4
      %s20 = int_to_ptr.hbm [resolvable:$true] %s19
      %s21 = sshll.u32 [#allocation3], 4
      %s22 = int_to_ptr.vmem [resolvable:$true] %s21
      %24 = dma.hbm_to_vmem [thread:$0]  %s20, 128, %s22, [#allocation4]
    $region5: #{tpu_custom_call.1} parent=1 // pred_fallthru
      _
    // Predicated region
    $region6: #{tpu_custom_call.1} parent=1 // pred_check
      _
    $region7: #{tpu_custom_call.1} parent=1 // pred_check_branch
      %26 = sbr.rel (0) target = $region9
    $region8: #{tpu_custom_call.1} parent=1 // pred_region
      %28 = vsyncadd [#allocation7], 0
      %s29 = sshll.u32 %s1, 4
      %s30 = int_to_ptr.hbm [resolvable:$true] %s29
      %s31 = sshll.u32 [#allocation6], 4
      %s32 = int_to_ptr.vmem [resolvable:$true] %s31
      %37 = dma.hbm_to_vmem [thread:$0]  %s30, 2048, %s32, [#allocation7], 128, 128, 8
    $region9: #{tpu_custom_call.1} parent=1 // pred_fallthru
      _
    // Predicated region
    $region10: #{tpu_custom_call.1} parent=1 // pred_check
      _
    $region11: #{tpu_custom_call.1} parent=1 // pred_check_branch
      %39 = sbr.rel (0) target = $region13
    $region12: #{tpu_custom_call.1} parent=1 // pred_region
      %41 = vsyncadd [#allocation7], 0
      %s43 = sshll.u32 %s2, 4
      %s44 = int_to_ptr.hbm [resolvable:$true] %s43
      %s45 = sshll.u32 [#allocation8], 4
      %s46 = int_to_ptr.vmem [resolvable:$true] %s45
      %48 = dma.hbm_to_vmem [thread:$0]  %s44, 128, %s46, [#allocation7]
    $region13: #{tpu_custom_call.1} parent=1 // pred_fallthru
      _
    // Predicated region
    $region14: #{tpu_custom_call.1} parent=1 // pred_check
      _
    $region15: #{tpu_custom_call.1} parent=1 // pred_check_branch
      %50 = sbr.rel (0) target = $region17
    $region16: #{tpu_custom_call.1} parent=1 // pred_region
      %52 = vsyncadd [#allocation10], 0
      %s53 = sshll.u32 %s3, 4
      %s54 = int_to_ptr.hbm [resolvable:$true] %s53
      %s55 = sshll.u32 [#allocation9], 4
      %s56 = int_to_ptr.vmem [resolvable:$true] %s55
      %61 = dma.hbm_to_vmem [thread:$0]  %s54, 4096, %s56, [#allocation10], 128, 128, 8
    $region17: #{tpu_custom_call.1} parent=1 // pred_fallthru
      _
    // Predicated region
    $region18: #{tpu_custom_call.1} parent=1 // pred_check
      _
    $region19: #{tpu_custom_call.1} parent=1 // pred_check_branch
      %63 = sbr.rel (0) target = $region21
    $region20: #{tpu_custom_call.1} parent=1 // pred_region
      _
    $region21: #{tpu_custom_call.1} parent=1 // pred_fallthru
      _
    // Predicated region
    $region22: #{tpu_custom_call.1} parent=1 // pred_check
      _
    $region23: #{tpu_custom_call.1} parent=1 // pred_check_branch
      %65 = sbr.rel (0) target = $region25
    $region24: #{tpu_custom_call.1} parent=1 // pred_region
      %67 = dma.done [#allocation4], 128
    $region25: #{tpu_custom_call.1} parent=1 // pred_fallthru
      _
    // Predicated region
    $region26: #{tpu_custom_call.1} parent=1 // pred_check
      _
    $region27: #{tpu_custom_call.1} parent=1 // pred_check_branch
      %69 = sbr.rel (0) target = $region29
    $region28: #{tpu_custom_call.1} parent=1 // pred_region
      %71 = dma.done [#allocation7], 2048
    $region29: #{tpu_custom_call.1} parent=1 // pred_fallthru
      _
    // Predicated region
    $region30: #{tpu_custom_call.1} parent=1 // pred_check
      _
    $region31: #{tpu_custom_call.1} parent=1 // pred_check_branch
      %73 = sbr.rel (0) target = $region33
    $region32: #{tpu_custom_call.1} parent=1 // pred_region
      %75 = dma.done [#allocation7], 128
    $region33: #{tpu_custom_call.1} parent=1 // pred_fallthru
      _
    // Predicated region
    $region34: #{tpu_custom_call.1} parent=1 // pred_check
      _
    $region35: #{tpu_custom_call.1} parent=1 // pred_check_branch
      %77 = sbr.rel (0) target = $region37
    $region36: #{tpu_custom_call.1} parent=1 // pred_region
      %79 = dma.done [#allocation10], 4096
    $region37: #{tpu_custom_call.1} parent=1 // pred_fallthru
      _
    %p80 = scmp.eq.s32.totalorder 0, 0
    // Predicated region
    $region38: #{tpu_custom_call.1} parent=1 // pred_check
      %p81 = pneg %p80
    $region39: #{tpu_custom_call.1} parent=1 // pred_check_branch
      %83 = sbr.rel (%p81) target = $region41
    $region40: #{tpu_custom_call.1} parent=1 // pred_region
      %84 = vst [vmem:[#allocation2] sm:$0xff] 0.0
    $region41: #{tpu_custom_call.1} parent=1 // pred_fallthru
      _
    %v85 = vld [vmem:[#allocation2] sm:$0xff]
    %v86 = vld [vmem:[#allocation3] sm:$0xff]
    %v87 = vld [vmem:[#allocation6] sm:$0xff]
    %v88 = vld [vmem:[#allocation6 + $0x8] sm:$0xff]
    %v89 = vld [vmem:[#allocation6 + $0x10] sm:$0xff]
    %v90 = vld [vmem:[#allocation6 + $0x18] sm:$0xff]
    %v91 = vld [vmem:[#allocation6 + $0x20] sm:$0xff]
    %v92 = vld [vmem:[#allocation6 + $0x28] sm:$0xff]
    %v93 = vld [vmem:[#allocation6 + $0x30] sm:$0xff]
    %v94 = vld [vmem:[#allocation6 + $0x38] sm:$0xff]
    %v95 = vld [vmem:[#allocation6 + $0x40] sm:$0xff]
    %v96 = vld [vmem:[#allocation6 + $0x48] sm:$0xff]
    %v97 = vld [vmem:[#allocation6 + $0x50] sm:$0xff]
    %v98 = vld [vmem:[#allocation6 + $0x58] sm:$0xff]
    %v99 = vld [vmem:[#allocation6 + $0x60] sm:$0xff]
    %v100 = vld [vmem:[#allocation6 + $0x68] sm:$0xff]
    %v101 = vld [vmem:[#allocation6 + $0x70] sm:$0xff]
    %v102 = vld [vmem:[#allocation6 + $0x78] sm:$0xff]
    %103 = vmatpush.msra.mxu0 %v102
    %104 = vmatpush.msra.mxu0 %v101
    %105 = vmatpush.msra.mxu0 %v100
    %106 = vmatpush.msra.mxu0 %v99
    %107 = vmatpush.msra.mxu0 %v98
    %108 = vmatpush.msra.mxu0 %v97
    %109 = vmatpush.msra.mxu0 %v96
    %110 = vmatpush.msra.mxu0 %v95
    %111 = vmatpush.msra.mxu0 %v94
    %112 = vmatpush.msra.mxu0 %v93
    %113 = vmatpush.msra.mxu0 %v92
    %114 = vmatpush.msra.mxu0 %v91
    %115 = vmatpush.msra.mxu0 %v90
    %116 = vmatpush.msra.mxu0 %v89
    %117 = vmatpush.msra.mxu0 %v88
    %118 = vmatpush.msra.mxu0 %v87
    %119 = vmatmul.f32.gmra.mxu0 %v86
    %v120 = vpop.f32.mrf.mxu0
    %v121 = vadd.f32 0.0, %v120
    %122 = vdwg.mxu0
    %v123 = vadd.f32 %v85, %v121
    %124 = vst [vmem:[#allocation2] sm:$0xff] %v123
    // Predicated region
    $region42: #{tpu_custom_call.1} parent=1 // pred_check
      %p125 = pneg %p80
    $region43: #{tpu_custom_call.1} parent=1 // pred_check_branch
      %127 = sbr.rel (%p125) target = $region45
    $region44: #{tpu_custom_call.1} parent=1 // pred_region
      %v128 = vld [vmem:[#allocation2] sm:$0xff]
      %v129 = vld [vmem:[#allocation8] sm:$0xff]
      %v130 = vld [vmem:[#allocation9] sm:$0xff]
      %v131 = vld [vmem:[#allocation9 + $0x8] sm:$0xff]
      %v132 = vld [vmem:[#allocation9 + $0x10] sm:$0xff]
      %v133 = vld [vmem:[#allocation9 + $0x18] sm:$0xff]
      %v134 = vld [vmem:[#allocation9 + $0x20] sm:$0xff]
      %v135 = vld [vmem:[#allocation9 + $0x28] sm:$0xff]
      %v136 = vld [vmem:[#allocation9 + $0x30] sm:$0xff]
      %v137 = vld [vmem:[#allocation9 + $0x38] sm:$0xff]
      %v138 = vld [vmem:[#allocation9 + $0x40] sm:$0xff]
      %v139 = vld [vmem:[#allocation9 + $0x48] sm:$0xff]
      %v140 = vld [vmem:[#allocation9 + $0x50] sm:$0xff]
      %v141 = vld [vmem:[#allocation9 + $0x58] sm:$0xff]
      %v142 = vld [vmem:[#allocation9 + $0x60] sm:$0xff]
      %v143 = vld [vmem:[#allocation9 + $0x68] sm:$0xff]
      %v144 = vld [vmem:[#allocation9 + $0x70] sm:$0xff]
      %v145 = vld [vmem:[#allocation9 + $0x78] sm:$0xff]
      %v146 = vld [vmem:[#allocation9 + $0x80] sm:$0xff]
      %v147 = vld [vmem:[#allocation9 + $0x88] sm:$0xff]
      %v148 = vld [vmem:[#allocation9 + $0x90] sm:$0xff]
      %v149 = vld [vmem:[#allocation9 + $0x98] sm:$0xff]
      %v150 = vld [vmem:[#allocation9 + $0xa0] sm:$0xff]
      %v151 = vld [vmem:[#allocation9 + $0xa8] sm:$0xff]
      %v152 = vld [vmem:[#allocation9 + $0xb0] sm:$0xff]
      %v153 = vld [vmem:[#allocation9 + $0xb8] sm:$0xff]
      %v154 = vld [vmem:[#allocation9 + $0xc0] sm:$0xff]
      %v155 = vld [vmem:[#allocation9 + $0xc8] sm:$0xff]
      %v156 = vld [vmem:[#allocation9 + $0xd0] sm:$0xff]
      %v157 = vld [vmem:[#allocation9 + $0xd8] sm:$0xff]
      %v158 = vld [vmem:[#allocation9 + $0xe0] sm:$0xff]
      %v159 = vld [vmem:[#allocation9 + $0xe8] sm:$0xff]
      %v160 = vld [vmem:[#allocation9 + $0xf0] sm:$0xff]
      %v161 = vld [vmem:[#allocation9 + $0xf8] sm:$0xff]
      %v162 = vld [vmem:[%s4] sm:$0x1]
      %v164 = vperm.slane %v162, 0
      %166 = vmatpush.msra.mxu0 %v145
      %167 = vmatpush.msra.mxu0 %v144
      %168 = vmatpush.msra.mxu0 %v143
      %169 = vmatpush.msra.mxu0 %v142
      %170 = vmatpush.msra.mxu0 %v141
      %171 = vmatpush.msra.mxu0 %v140
      %172 = vmatpush.msra.mxu0 %v139
      %173 = vmatpush.msra.mxu0 %v138
      %174 = vmatpush.msra.mxu0 %v137
      %175 = vmatpush.msra.mxu0 %v136
      %176 = vmatpush.msra.mxu0 %v135
      %177 = vmatpush.msra.mxu0 %v134
      %178 = vmatpush.msra.mxu0 %v133
      %179 = vmatpush.msra.mxu0 %v132
      %180 = vmatpush.msra.mxu0 %v131
      %181 = vmatpush.msra.mxu0 %v130
      %182 = vmatmul.f32.gmra.mxu0 %v128
      %v183 = vpop.f32.mrf.mxu0
      %v184 = vadd.f32 %v164, %v183
      %185 = vdwg.mxu0
      %186 = vmatpush.msra.mxu0 %v161
      %187 = vmatpush.msra.mxu0 %v160
      %188 = vmatpush.msra.mxu0 %v159
      %189 = vmatpush.msra.mxu0 %v158
      %190 = vmatpush.msra.mxu0 %v157
      %191 = vmatpush.msra.mxu0 %v156
      %192 = vmatpush.msra.mxu0 %v155
      %193 = vmatpush.msra.mxu0 %v154
      %194 = vmatpush.msra.mxu0 %v153
      %195 = vmatpush.msra.mxu0 %v152
      %196 = vmatpush.msra.mxu0 %v151
      %197 = vmatpush.msra.mxu0 %v150
      %198 = vmatpush.msra.mxu0 %v149
      %199 = vmatpush.msra.mxu0 %v148
      %200 = vmatpush.msra.mxu0 %v147
      %201 = vmatpush.msra.mxu0 %v146
      %202 = vmatmul.f32.gmra.mxu0 %v129
      %v203 = vpop.f32.mrf.mxu0
      %v204 = vadd.f32 %v184, %v203
      %205 = vdwg.mxu0
      %v206 = vmax.f32 %v204, 0.0
      %207 = vst [vmem:[#allocation11] sm:$0xff] %v206
    $region45: #{tpu_custom_call.1} parent=1 // pred_fallthru
      _
    // Predicated region
    $region46: #{tpu_custom_call.1} parent=1 // pred_check
      _
    $region47: #{tpu_custom_call.1} parent=1 // pred_check_branch
      %209 = sbr.rel (0) target = $region49
    $region48: #{tpu_custom_call.1} parent=1 // pred_region
      %211 = vsyncadd [#allocation5], 0
      %s213 = sshll.u32 [#allocation11], 4
      %s214 = int_to_ptr.vmem [resolvable:$true] %s213
      %s215 = sshll.u32 %s5, 4
      %s216 = int_to_ptr.hbm [resolvable:$true] %s215
      %218 = dma.vmem_to_hbm [thread:$0]  %s214, 128, %s216, [#allocation5]
    $region49: #{tpu_custom_call.1} parent=1 // pred_fallthru
      _
    // Predicated region
    $region50: #{tpu_custom_call.1} parent=1 // pred_check
      _
    $region51: #{tpu_custom_call.1} parent=1 // pred_check_branch
      %220 = sbr.rel (0) target = $region53
    $region52: #{tpu_custom_call.1} parent=1 // pred_region
      %222 = dma.done [#allocation5], 128
    $region53: #{tpu_custom_call.1} parent=1 // pred_fallthru
      _
    %223 = vsyncpa [#allocation4], 1
    %224 = vsyncpa [#allocation7], 1
    %225 = vsyncpa [#allocation10], 1
    %226 = vsyncpa [#allocation5], 1

</llo_original>
